<compile_context>
chip_gen: v5e
topology: v5e:2x2
jax: 0.10.0
libtpu: 0.0.40
codegen_flags: <defaults>
</compile_context>

<pallas_src>
import functools

import jax
import jax.numpy as jnp
from jax import lax
from jax.experimental import pallas as pl
from jax.experimental.pallas import tpu as pltpu

EPS = 1e-8  # nn.CosineSimilarity default eps


def _cosine_loss_kernel(x1_ref, x2_ref, out_ref, acc_ref, *,
                        margin, tiles_per_chunk, tb, rows_total, needs_mask):
    """One (tb, D) row tile per step; per-chunk partial sum written at the end.

    x1_ref, x2_ref : (tb, D)     VMEM input tiles (any float dtype)
    out_ref        : (1, 8, 128) VMEM output block (per-chunk partial sum,
                                 broadcast across the block for lane-dense vst)
    acc_ref        : (tb, 1)     VMEM per-row loss accumulator (scratch)
    """
    p = pl.program_id(0)   # chunk (parallel axis — megacore-shardable)
    i = pl.program_id(1)   # row tile within the chunk (reduction axis)

    @pl.when(i == 0)
    def _init():
        acc_ref[...] = jnp.zeros_like(acc_ref)

    x1 = x1_ref[...].astype(jnp.float32)
    x2 = x2_ref[...].astype(jnp.float32)

    # Row reductions over the feature (lane) axis; keep 2-D shapes.
    dot = jnp.sum(x1 * x2, axis=1, keepdims=True)   # (tb, 1)
    s1 = jnp.sum(x1 * x1, axis=1, keepdims=True)    # (tb, 1) = ||x1||^2
    s2 = jnp.sum(x2 * x2, axis=1, keepdims=True)    # (tb, 1) = ||x2||^2

    # x1·x2 / sqrt(max(||x1||^2*||x2||^2, eps^2)) — rsqrt goes to the EUP slot.
    inv_denom = lax.rsqrt(jnp.maximum(s1 * s2, jnp.float32(EPS * EPS)))
    sim = dot * inv_denom
    loss = jnp.clip(1.0 - sim - margin, 0.0, 2.0)    # (tb, 1)

    if needs_mask:
        # Padding rows of the boundary tile AND whole phantom overhang tiles
        # (tile_idx >= ceil(B/tb)) contribute 0.  Keep this a select, not a
        # multiply: padding rows may hold NaN/Inf.
        tile_idx = p * tiles_per_chunk + i
        row_ids = tile_idx * tb + lax.broadcasted_iota(jnp.int32, loss.shape, 0)
        loss = jnp.where(row_ids < rows_total, loss, 0.0)

    acc_ref[...] += loss

    @pl.when(i == tiles_per_chunk - 1)
    def _finalize():
        chunk_sum = jnp.sum(acc_ref[...])            # one cross-sublane reduce
        out_ref[...] = jnp.full(out_ref.shape, chunk_sum, jnp.float32)


def _vmem_capacity_bytes():
    """Physical VMEM of the current generation (v5e/v6e: 128 MiB, v7x: 64 MiB)."""
    try:
        return int(pltpu.get_tpu_info().vmem_capacity_bytes)
    except Exception:
        return 64 << 20  # conservative (v7x) fallback


def _choose_tb(batch, feat, itemsize, vmem_budget, max_tb=4096):
    """Pick a row tile: big enough to amortize the ~0.35 us/step pipeline
    overhead, small enough that 2 inputs x 2 buffers (input dtype) plus the
    in-kernel f32 upcast temporaries stay inside `vmem_budget`."""
    align = 8 * max(1, 4 // itemsize)            # 8 (f32) / 16 (bf16) / 32 (i8)
    # Per row: 2 inputs x 2 pipeline buffers x itemsize, plus ~4 live f32
    # copies of the tile (x1, x2 upcasts and products) managed by the compiler.
    per_row = feat * (4 * itemsize + 4 * 4)
    tb = vmem_budget // max(per_row, 1)
    tb = max(align, min(int(tb), max_tb))
    padded_b = -(-batch // align) * align
    tb = min(tb, padded_b)
    return max(align, (tb // align) * align)


def positive_cosine_loss(x1, x2, margin=0.0, *, tb=None):
    """Pallas implementation of PositiveCosineLoss.forward (returns scalar)."""
    assert x1.shape == x2.shape and x1.ndim == 2
    assert x1.dtype == x2.dtype
    B, D = x1.shape
    itemsize = jnp.dtype(x1.dtype).itemsize

    vmem_cap = _vmem_capacity_bytes()
    # Keep the full live footprint well under the scoped-VMEM budget of every
    # generation (v7x has half the VMEM of v5e/v6e); beyond a few MiB per tile
    # the kernel is on the HBM-roofline plateau anyway.
    tile_budget = min(int(vmem_cap * 0.40), 40 << 20)

    align = 8 * max(1, 4 // itemsize)
    if tb is None:
        tb = _choose_tb(B, D, itemsize, tile_budget)
    else:
        padded_b = -(-B // align) * align
        tb = max(align, (min(int(tb), padded_b) // align) * align)

    num_tiles = -(-B // tb)
    # Unconditional 2-way split over batch chunks whenever there is more than
    # one tile, so v7x's second TensorCore always gets work.  The last chunk
    # may contain phantom overhang tiles: the index_map clamps them to a valid
    # block (in-bounds DMA) and the in-kernel row mask zeroes their rows.
    num_chunks = 2 if num_tiles >= 2 else 1
    tiles_per_chunk = -(-num_tiles // num_chunks)
    needs_mask = (num_chunks * tiles_per_chunk * tb) != B

    tile_in_bytes = tb * D * itemsize
    # Deep (triple) buffering only pays when per-step DMA is short enough that
    # the fixed per-step overhead would otherwise expose it.
    use_deep_buffer = (tile_in_bytes <= (256 << 10)) and (tiles_per_chunk >= 4)
    n_buf = 3 if use_deep_buffer else 2

    kernel = functools.partial(
        _cosine_loss_kernel,
        margin=float(margin),
        tiles_per_chunk=tiles_per_chunk,
        tb=tb,
        rows_total=B,
        needs_mask=needs_mask,
    )

    def in_index_map(p, i):
        t = p * tiles_per_chunk + i
        return (jnp.minimum(t, num_tiles - 1), 0)   # clamp phantom tiles

    spec_kwargs = {"pipeline_mode": pl.Buffered(3)} if use_deep_buffer else {}
    in_spec = pl.BlockSpec((tb, D), in_index_map, **spec_kwargs)

    # Dtype-aware VMEM accounting: pipeline buffers in the *input* dtype plus
    # the in-kernel f32 upcast temporaries, accumulator (lane-padded) and the
    # tiny lane-dense output blocks.
    vmem_needed = (2 * n_buf * tile_in_bytes
                   + 4 * tb * D * 4
                   + tb * 128 * 4
                   + 2 * 8 * 128 * 4)
    vmem_cap_limit = max(16 << 20, min(vmem_cap // 2, 96 << 20))
    vmem_limit = int(min(max(int(1.5 * vmem_needed), 16 << 20), vmem_cap_limit))

    cost = pl.CostEstimate(
        flops=int(6 * B * D),                 # 3 muls + 3 reduce-adds per element
        transcendentals=int(B),               # one rsqrt per row
        bytes_accessed=int(2 * B * D * itemsize + num_chunks * 8 * 128 * 4),
    )

    partials = pl.pallas_call(
        kernel,
        out_shape=jax.ShapeDtypeStruct((num_chunks, 8, 128), jnp.float32),
        grid_spec=pltpu.PrefetchScalarGridSpec(
            num_scalar_prefetch=0,
            grid=(num_chunks, tiles_per_chunk),
            in_specs=[in_spec, in_spec],
            out_specs=pl.BlockSpec((1, 8, 128), lambda p, i: (p, 0, 0)),
            scratch_shapes=[pltpu.VMEM((tb, 1), jnp.float32)],
        ),
        compiler_params=pltpu.CompilerParams(
            # Chunk axis is independent (megacore-shardable); the tile axis
            # carries the per-chunk accumulator, hence "arbitrary".
            dimension_semantics=("parallel", "arbitrary"),
            vmem_limit_bytes=vmem_limit,
        ),
        cost_estimate=cost,
    )(x1, x2)

    # Final reduction over per-chunk partial sums; divide by the true batch.
    return jnp.sum(partials[:, 0, 0]) / jnp.float32(B)


def _ref_loss(a, b, margin=0.0):
    """Pure-JAX reference (same math as modern torch cosine_similarity)."""
    a = a.astype(jnp.float32)
    b = b.astype(jnp.float32)
    w12 = jnp.sum(a * b, axis=1)
    w1 = jnp.sum(a * a, axis=1)
    w2 = jnp.sum(b * b, axis=1)
    sim = w12 / jnp.sqrt(jnp.maximum(w1 * w2, EPS * EPS))
    return jnp.mean(jnp.clip(1.0 - sim - margin, 0.0, 2.0))


if __name__ == "__main__":
    key = jax.random.PRNGKey(0)
    k1, k2, k3, k4 = jax.random.split(key, 4)

    # Primary small test: 16 embedding pairs, hidden=128 (single full tile).
    B, D = 16, 128
    x1 = jax.random.normal(k1, (B, D), dtype=jnp.float32)
    x2 = jax.random.normal(k2, (B, D), dtype=jnp.float32)
    loss = jax.block_until_ready(positive_cosine_loss(x1, x2, margin=0.0))
    ref = _ref_loss(x1, x2, 0.0)
    assert jnp.allclose(loss, ref, rtol=1e-5, atol=1e-5), (loss, ref)

    # Ragged batch + odd tile count (3 tiles -> 2 chunks with one phantom
    # overhang tile) — exercises the clamped index_map and the row mask.
    B2 = 20
    y1 = jax.random.normal(k3, (B2, D), dtype=jnp.float32)
    y2 = jax.random.normal(k4, (B2, D), dtype=jnp.float32)
    loss2 = jax.block_until_ready(positive_cosine_loss(y1, y2, margin=0.1, tb=8))
    ref2 = _ref_loss(y1, y2, 0.1)
    assert jnp.allclose(loss2, ref2, rtol=1e-5, atol=1e-5), (loss2, ref2)

    # Even multi-chunk path (2 chunks x 2 tiles, no mask).
    B3 = 32
    z1 = jax.random.normal(k1, (B3, D), dtype=jnp.float32)
    z2 = jax.random.normal(k2, (B3, D), dtype=jnp.float32)
    loss3 = jax.block_until_ready(positive_cosine_loss(z1, z2, tb=8))
    ref3 = _ref_loss(z1, z2)
    assert jnp.allclose(loss3, ref3, rtol=1e-5, atol=1e-5), (loss3, ref3)

    # Many short steps per chunk — exercises the triple-buffered input path.
    B4 = 96
    w1 = jax.random.normal(k3, (B4, D), dtype=jnp.float32)
    w2 = jax.random.normal(k4, (B4, D), dtype=jnp.float32)
    loss4 = jax.block_until_ready(positive_cosine_loss(w1, w2, tb=8))
    ref4 = _ref_loss(w1, w2)
    assert jnp.allclose(loss4, ref4, rtol=1e-5, atol=1e-5), (loss4, ref4)

    # bf16 inputs fed directly (no wrapper pre-cast) — half the HBM traffic;
    # the in-kernel f32 upcast keeps the math identical to the reference.
    B5, D5 = 64, 256
    v1 = jax.random.normal(k1, (B5, D5), dtype=jnp.float32).astype(jnp.bfloat16)
    v2 = jax.random.normal(k2, (B5, D5), dtype=jnp.float32).astype(jnp.bfloat16)
    loss5 = jax.block_until_ready(positive_cosine_loss(v1, v2, margin=0.05))
    ref5 = _ref_loss(v1, v2, 0.05)
    assert jnp.allclose(loss5, ref5, rtol=1e-5, atol=1e-5), (loss5, ref5)

    print("KERNEL_OK")
</pallas_src>

<mosaic_0001>
module attributes {stable_mosaic.version = 11 : i64} {
  func.func @_cosine_loss_kernel(%arg0: i32, %arg1: i32, %arg2: memref<16x128xf32, #tpu.memory_space<vmem>>, %arg3: memref<16x128xf32, #tpu.memory_space<vmem>>, %arg4: memref<1x8x128xf32, #tpu.memory_space<vmem>>, %arg5: memref<16x1xf32, #tpu.memory_space<vmem>>) attributes {dimension_semantics = [#tpu.dimension_semantics<parallel>, #tpu.dimension_semantics<arbitrary>], iteration_bounds = array<i64: 1, 1>, scalar_prefetch = 0 : i64, scratch_operands = 1 : i64, tpu.core_type = #tpu.core_type<tc>, window_params = [{transform_indices = @transform_0, window_bounds = array<i64: 16, 128>}, {transform_indices = @transform_1, window_bounds = array<i64: 16, 128>}, {transform_indices = @transform_2, window_bounds = array<i64: 1, 8, 128>}]} {
    %c0_i32 = arith.constant 0 : i32
    %0 = arith.cmpi eq, %arg1, %c0_i32 : i32
    %1 = arith.extui %0 : i1 to i32
    %c0_i32_0 = arith.constant 0 : i32
    %2 = arith.cmpi ne, %1, %c0_i32_0 : i32
    scf.if %2 {
      %cst_17 = arith.constant 0.000000e+00 : f32
      %33 = vector.broadcast %cst_17 : f32 to vector<16x1xf32>
      %c0_18 = arith.constant 0 : index
      %c0_19 = arith.constant 0 : index
      %34 = vector.load %arg5[%c0_18, %c0_19] : memref<16x1xf32, #tpu.memory_space<vmem>>, vector<16x1xf32>
      tpu.vector_store %arg5[%c0_18, %c0_19], %33 {strides = array<i32>} : memref<16x1xf32, #tpu.memory_space<vmem>>, vector<16x1xf32>,
    } else {
    }
    %c0 = arith.constant 0 : index
    %c0_1 = arith.constant 0 : index
    %3 = vector.load %arg2[%c0, %c0_1] : memref<16x128xf32, #tpu.memory_space<vmem>>, vector<16x128xf32>
    %c0_2 = arith.constant 0 : index
    %c0_3 = arith.constant 0 : index
    %4 = vector.load %arg3[%c0_2, %c0_3] : memref<16x128xf32, #tpu.memory_space<vmem>>, vector<16x128xf32>
    %5 = arith.mulf %3, %4 : vector<16x128xf32>
    %cst = arith.constant dense<0.000000e+00> : vector<16xf32>
    %6 = vector.multi_reduction <add>, %5, %cst [1] : vector<16x128xf32> to vector<16xf32>
    %7 = vector.shape_cast %6 : vector<16xf32> to vector<16x1xf32>
    %8 = arith.mulf %3, %3 : vector<16x128xf32>
    %cst_4 = arith.constant dense<0.000000e+00> : vector<16xf32>
    %9 = vector.multi_reduction <add>, %8, %cst_4 [1] : vector<16x128xf32> to vector<16xf32>
    %10 = vector.shape_cast %9 : vector<16xf32> to vector<16x1xf32>
    %11 = arith.mulf %4, %4 : vector<16x128xf32>
    %cst_5 = arith.constant dense<0.000000e+00> : vector<16xf32>
    %12 = vector.multi_reduction <add>, %11, %cst_5 [1] : vector<16x128xf32> to vector<16xf32>
    %13 = vector.shape_cast %12 : vector<16xf32> to vector<16x1xf32>
    %14 = arith.mulf %10, %13 : vector<16x1xf32>
    %cst_6 = arith.constant 1.000000e-16 : f32
    %15 = vector.broadcast %cst_6 : f32 to vector<16x1xf32>
    %16 = arith.maximumf %14, %15 : vector<16x1xf32>
    %17 = math.rsqrt %16 : vector<16x1xf32>
    %18 = arith.mulf %7, %17 : vector<16x1xf32>
    %cst_7 = arith.constant 1.000000e+00 : f32
    %19 = vector.broadcast %cst_7 : f32 to vector<16x1xf32>
    %20 = arith.subf %19, %18 : vector<16x1xf32>
    %cst_8 = arith.constant 0.000000e+00 : f32
    %21 = vector.broadcast %cst_8 : f32 to vector<16x1xf32>
    %22 = arith.subf %20, %21 : vector<16x1xf32>
    %cst_9 = arith.constant 0.000000e+00 : f32
    %cst_10 = arith.constant 2.000000e+00 : f32
    %23 = vector.broadcast %cst_9 : f32 to vector<16x1xf32>
    %24 = arith.maximumf %23, %22 : vector<16x1xf32>
    %25 = vector.broadcast %cst_10 : f32 to vector<16x1xf32>
    %26 = arith.minimumf %25, %24 : vector<16x1xf32>
    %c0_11 = arith.constant 0 : index
    %c0_12 = arith.constant 0 : index
    %27 = vector.load %arg5[%c0_11, %c0_12] : memref<16x1xf32, #tpu.memory_space<vmem>>, vector<16x1xf32>
    %28 = arith.addf %27, %26 : vector<16x1xf32>
    %c0_13 = arith.constant 0 : index
    %c0_14 = arith.constant 0 : index
    %29 = vector.load %arg5[%c0_13, %c0_14] : memref<16x1xf32, #tpu.memory_space<vmem>>, vector<16x1xf32>
    tpu.vector_store %arg5[%c0_13, %c0_14], %28 {strides = array<i32>} : memref<16x1xf32, #tpu.memory_space<vmem>>, vector<16x1xf32>,
    %c0_i32_15 = arith.constant 0 : i32
    %30 = arith.cmpi eq, %arg1, %c0_i32_15 : i32
    %31 = arith.extui %30 : i1 to i32
    %c0_i32_16 = arith.constant 0 : i32
    %32 = arith.cmpi ne, %31, %c0_i32_16 : i32
    scf.if %32 {
      %c0_17 = arith.constant 0 : index
      %c0_18 = arith.constant 0 : index
      %33 = vector.load %arg5[%c0_17, %c0_18] : memref<16x1xf32, #tpu.memory_space<vmem>>, vector<16x1xf32>
      %34 = vector.shape_cast %33 : vector<16x1xf32> to vector<1x16x1xf32>
      %cst_19 = arith.constant dense<0.000000e+00> : vector<1xf32>
      %35 = vector.multi_reduction <add>, %34, %cst_19 [1, 2] : vector<1x16x1xf32> to vector<1xf32>
      %36 = vector.shape_cast %35 : vector<1xf32> to vector<1x1x1xf32>
      %37 = vector.extract %36[0, 0, 0] : f32 from vector<1x1x1xf32>
      %38 = vector.broadcast %37 : f32 to vector<1x8x128xf32>
      %c0_20 = arith.constant 0 : index
      %c0_21 = arith.constant 0 : index
      %c0_22 = arith.constant 0 : index
      %39 = vector.load %arg4[%c0_20, %c0_21, %c0_22] : memref<1x8x128xf32, #tpu.memory_space<vmem>>, vector<1x8x128xf32>
      tpu.vector_store %arg4[%c0_20, %c0_21, %c0_22], %38 {strides = array<i32>} : memref<1x8x128xf32, #tpu.memory_space<vmem>>, vector<1x8x128xf32>,
    } else {
    }
    return
  }
  func.func @transform_0(%arg0: i32, %arg1: i32) -> (i32, i32) {
    %c1_i32 = arith.constant 1 : i32
    %0 = arith.muli %arg0, %c1_i32 : i32
    %1 = arith.addi %0, %arg1 : i32
    %c0_i32 = arith.constant 0 : i32
    %2 = arith.minsi %1, %c0_i32 : i32
    %c0_i32_0 = arith.constant 0 : i32
    %c0_i32_1 = arith.constant 0 : i32
    return %2, %c0_i32_0 : i32, i32
  }
  func.func @transform_1(%arg0: i32, %arg1: i32) -> (i32, i32) {
    %c1_i32 = arith.constant 1 : i32
    %0 = arith.muli %arg0, %c1_i32 : i32
    %1 = arith.addi %0, %arg1 : i32
    %c0_i32 = arith.constant 0 : i32
    %2 = arith.minsi %1, %c0_i32 : i32
    %c0_i32_0 = arith.constant 0 : i32
    %c0_i32_1 = arith.constant 0 : i32
    return %2, %c0_i32_0 : i32, i32
  }
  func.func @transform_2(%arg0: i32, %arg1: i32) -> (i32, i32, i32) {
    %c0_i32 = arith.constant 0 : i32
    %c0_i32_0 = arith.constant 0 : i32
    %c0_i32_1 = arith.constant 0 : i32
    return %arg0, %c0_i32, %c0_i32_0 : i32, i32, i32
  }
}

</mosaic_0001>

<llo_original>
// kernel: tpu_custom_call.1
$region0: #{tpu_custom_call.1}
  #allocation0 [shape = 'u32[]', space=smem, size = 0x4, offset = 0x4, fixed_abs, tag = 'smem constant byte address 0x4 - core index']
  #allocation1 [shape = 'u32[72,128]{1,0:T(1,128)}', space=vmem, size = 0x9000, scoped, tag = 'internal scratch']
  #allocation2 [shape = 'f32[16,1]{1,0:T(8,128)}', space=vmem, size = 0x2000, scoped, tag = 'scratch operand']
  %s0 = inlined_call_operand.hbm [shape: f32[16,128], index: 0, kind: input, shape index: {}]
  %s1 = inlined_call_operand.hbm [shape: f32[16,128], index: 1, kind: input, shape index: {}]
  %s2 = inlined_call_operand.hbm [shape: f32[1,8,128], index: 2, kind: output, shape index: {}]
  %s3 = sld [smem:[#allocation0]]
  $region34: #{tpu_custom_call.1} parent=0
    _
  %s5 = ssub.s32 1, %s3
  %s6 = scalar_select 0, %s5, %s3
  $region1: #{tpu_custom_call.1} parent=0
    #allocation3 [shape = 'u8[8192]{0}', space=vmem, size = 0x2000, scoped, tag = 'input window, operand 0, single buffered']
    #allocation4 [shape = 's32[1]{0}', space=sflag, size = 0x4, scoped, tag = 'scoped memory for tpu_custom_call.1']
    #allocation5 [shape = 's32[1]{0}', space=sflag, size = 0x4, scoped, tag = 'scoped memory for tpu_custom_call.1']
    #allocation6 [shape = 'u8[8192]{0}', space=vmem, size = 0x2000, scoped, tag = 'input window, operand 1, single buffered']
    #allocation7 [shape = 's32[1]{0}', space=sflag, size = 0x4, scoped, tag = 'scoped memory for tpu_custom_call.1']
    #allocation8 [shape = 'u8[4096]{0}', space=vmem, size = 0x1000, scoped, tag = 'output window, operand 0, single buffered']
    %7 = vsyncpa [#allocation4], 0
    %8 = vsyncpa [#allocation7], 0
    %9 = vsyncpa [#allocation5], 0
    // Predicated region
    $region2: #{tpu_custom_call.1} parent=1 // pred_check
      _
    $region3: #{tpu_custom_call.1} parent=1 // pred_check_branch
      %11 = sbr.rel (0) target = $region5
    $region4: #{tpu_custom_call.1} parent=1 // pred_region
      %s12 = sadd.s32 0, 0
      %p13 = scmp.lt.s32.totalorder %s12, 0
      %s14 = scalar_select %p13, %s12, 0
      %s15 = smul.u32 2, %s14
      %17 = vsyncadd [#allocation4], 0
      %s18 = smul.addr %s15, 8
      %s19 = scalar_lea.hbm %s0, %s18
      %s20 = sshll.u32 %s19, 4
      %s21 = int_to_ptr.hbm [resolvable:$true] %s20
      %s22 = sshll.u32 [#allocation3], 4
      %s23 = int_to_ptr.vmem [resolvable:$true] %s22
      %28 = dma.hbm_to_vmem [thread:$0]  %s21, 256, %s23, [#allocation4], 128, 128, 8
    $region5: #{tpu_custom_call.1} parent=1 // pred_fallthru
      _
    // Predicated region
    $region6: #{tpu_custom_call.1} parent=1 // pred_check
      _
    $region7: #{tpu_custom_call.1} parent=1 // pred_check_branch
      %30 = sbr.rel (0) target = $region9
    $region8: #{tpu_custom_call.1} parent=1 // pred_region
      %s31 = sadd.s32 0, 0
      %p32 = scmp.lt.s32.totalorder %s31, 0
      %s33 = scalar_select %p32, %s31, 0
      %s34 = smul.u32 2, %s33
      %36 = vsyncadd [#allocation7], 0
      %s37 = smul.addr %s34, 8
      %s38 = scalar_lea.hbm %s1, %s37
      %s39 = sshll.u32 %s38, 4
      %s40 = int_to_ptr.hbm [resolvable:$true] %s39
      %s41 = sshll.u32 [#allocation6], 4
      %s42 = int_to_ptr.vmem [resolvable:$true] %s41
      %47 = dma.hbm_to_vmem [thread:$0]  %s40, 256, %s42, [#allocation7], 128, 128, 8
    $region9: #{tpu_custom_call.1} parent=1 // pred_fallthru
      _
    // Predicated region
    $region10: #{tpu_custom_call.1} parent=1 // pred_check
      _
    $region11: #{tpu_custom_call.1} parent=1 // pred_check_branch
      %49 = sbr.rel (0) target = $region13
    $region12: #{tpu_custom_call.1} parent=1 // pred_region
      %51 = dma.done [#allocation4], 256
    $region13: #{tpu_custom_call.1} parent=1 // pred_fallthru
      _
    // Predicated region
    $region14: #{tpu_custom_call.1} parent=1 // pred_check
      _
    $region15: #{tpu_custom_call.1} parent=1 // pred_check_branch
      %53 = sbr.rel (0) target = $region17
    $region16: #{tpu_custom_call.1} parent=1 // pred_region
      %55 = dma.done [#allocation7], 256
    $region17: #{tpu_custom_call.1} parent=1 // pred_fallthru
      _
    %s56 = sadd.s32 0, 0
    %p57 = scmp.lt.s32.totalorder %s56, 0
    %s58 = scalar_select %p57, %s56, 0
    %s59 = smul.u32 2, %s58
    %s60 = sadd.s32 0, 0
    %p61 = scmp.lt.s32.totalorder %s60, 0
    %s62 = scalar_select %p61, %s60, 0
    %s63 = smul.u32 2, %s62
    %p64 = scmp.eq.s32.totalorder 0, 0
    // Predicated region
    $region18: #{tpu_custom_call.1} parent=1 // pred_check
      %p65 = pneg %p64
    $region19: #{tpu_custom_call.1} parent=1 // pred_check_branch
      %67 = sbr.rel (%p65) target = $region21
    $region20: #{tpu_custom_call.1} parent=1 // pred_region
      %vm68 = vcmask 7168
      %69 = vst.msk [vmem:[#allocation2] sm:$0xff] %vm68, 0.0
      %70 = vst.msk [vmem:[#allocation2 + $0x8] sm:$0xff] %vm68, 0.0
    $region21: #{tpu_custom_call.1} parent=1 // pred_fallthru
      _
    %v71 = vld [vmem:[#allocation3] sm:$0xff]
    %v72 = vld [vmem:[#allocation3 + $0x8] sm:$0xff]
    %v73 = vld [vmem:[#allocation6] sm:$0xff]
    %v74 = vld [vmem:[#allocation6 + $0x8] sm:$0xff]
    %v75 = vmul.f32 %v71, %v73
    %v76 = vmul.f32 %v72, %v74
    %77 = vadd.xlane.f32.xlu0 %v75
    %v78 = vpop.xlane.xlu0 %77
    %79 = vadd.xlane.f32.xlu0 %v76
    %v80 = vpop.xlane.xlu0 %79
    %v81 = vmul.f32 %v71, %v71
    %v82 = vmul.f32 %v72, %v72
    %83 = vadd.xlane.f32.xlu0 %v81
    %v84 = vpop.xlane.xlu0 %83
    %85 = vadd.xlane.f32.xlu0 %v82
    %v86 = vpop.xlane.xlu0 %85
    %v87 = vmul.f32 %v73, %v73
    %v88 = vmul.f32 %v74, %v74
    %89 = vadd.xlane.f32.xlu0 %v87
    %v90 = vpop.xlane.xlu0 %89
    %91 = vadd.xlane.f32.xlu0 %v88
    %v92 = vpop.xlane.xlu0 %91
    %v93 = vmul.f32 %v84, %v90
    %v94 = vmul.f32 %v86, %v92
    %v95 = vmax.f32 %v93, 1e-16
    %v96 = vmax.f32 %v94, 1e-16
    %v97 = vrsqrt.pop %v95
    %v98 = vmul.f32 %v97, %v95
    %v99 = vmul.f32 %v98, %v97
    %v100 = vmul.f32 0.5, %v99
    %v101 = vsub.f32 1.5, %v100
    %v102 = vmul.f32 %v97, %v101
    %vm103 = vweird.f32 %v95
    %vm104 = vweird.f32 %v97
    %vm105 = vmor %vm103, %vm104
    %v106 = vsel %vm105, %v97, %v102
    %v107 = vrsqrt.pop %v96
    %v108 = vmul.f32 %v107, %v96
    %v109 = vmul.f32 %v108, %v107
    %v110 = vmul.f32 0.5, %v109
    %v111 = vsub.f32 1.5, %v110
    %v112 = vmul.f32 %v107, %v111
    %vm113 = vweird.f32 %v96
    %vm114 = vweird.f32 %v107
    %vm115 = vmor %vm113, %vm114
    %v116 = vsel %vm115, %v107, %v112
    %v117 = vmul.f32 %v78, %v106
    %v118 = vmul.f32 %v80, %v116
    %v119 = vsub.f32 1.0, %v117
    %v120 = vsub.f32 1.0, %v118
    %v121 = vmax.f32 %v119, 0.0
    %v122 = vmax.f32 %v120, 0.0
    %v123 = vmin.f32 %v121, 2.0
    %v124 = vmin.f32 %v122, 2.0
    %v125 = vld [vmem:[#allocation2] sm:$0xff]
    %v126 = vld [vmem:[#allocation2 + $0x8] sm:$0xff]
    %v127 = vadd.f32 %v125, %v123
    %v128 = vadd.f32 %v126, %v124
    %vm129 = vcmask 7168
    %130 = vst.msk [vmem:[#allocation2] sm:$0xff] %vm129, %v127
    %131 = vst.msk [vmem:[#allocation2 + $0x8] sm:$0xff] %vm129, %v128
    // Predicated region
    $region22: #{tpu_custom_call.1} parent=1 // pred_check
      %p132 = pneg %p64
    $region23: #{tpu_custom_call.1} parent=1 // pred_check_branch
      %134 = sbr.rel (%p132) target = $region25
    $region24: #{tpu_custom_call.1} parent=1 // pred_region
      %v135 = vld [vmem:[#allocation2] sm:$0xff]
      %v136 = vld [vmem:[#allocation2 + $0x8] sm:$0xff]
      %v137 = vsel %vm129, %v135, 0.0
      %v138 = vsel %vm129, %v136, 0.0
      %v139 = vadd.f32 %v137, %v138
      %140 = vadd.xlane.f32.xlu0 %v139
      %v141 = vpop.xlane.xlu0 %140
      %v142 = vrot.slane %v141, 4
      %v143 = vadd.f32 %v141, %v142
      %v144 = vrot.slane %v143, 2
      %v145 = vadd.f32 %v143, %v144
      %v146 = vrot.slane %v145, 1
      %v147 = vadd.f32 %v145, %v146
      %s148 = vtos %v147
      %v149 = vstv %s148
      %150 = vst [vmem:[#allocation8] sm:$0xff] %v149
    $region25: #{tpu_custom_call.1} parent=1 // pred_fallthru
      _
    // Predicated region
    $region26: #{tpu_custom_call.1} parent=1 // pred_check
      _
    $region27: #{tpu_custom_call.1} parent=1 // pred_check_branch
      %152 = sbr.rel (0) target = $region29
    $region28: #{tpu_custom_call.1} parent=1 // pred_region
      %154 = vsyncadd [#allocation5], 0
      %s156 = sshll.u32 [#allocation8], 4
      %s157 = int_to_ptr.vmem [resolvable:$true] %s156
      %s158 = sshll.u32 %s2, 4
      %s159 = int_to_ptr.hbm [resolvable:$true] %s158
      %161 = dma.vmem_to_hbm [thread:$0]  %s157, 128, %s159, [#allocation5]
    $region29: #{tpu_custom_call.1} parent=1 // pred_fallthru
      _
    // Predicated region
    $region30: #{tpu_custom_call.1} parent=1 // pred_check
      _
    $region31: #{tpu_custom_call.1} parent=1 // pred_check_branch
      %163 = sbr.rel (0) target = $region33
    $region32: #{tpu_custom_call.1} parent=1 // pred_region
      %165 = dma.done [#allocation5], 128
    $region33: #{tpu_custom_call.1} parent=1 // pred_fallthru
      _
    %166 = vsyncpa [#allocation4], 1
    %167 = vsyncpa [#allocation7], 1
    %168 = vsyncpa [#allocation5], 1

</llo_original>
